<compile_context>
chip_gen: v7x
topology: tpu7x:2x2x1
jax: 0.10.0
libtpu: 0.0.40
codegen_flags: <defaults>
</compile_context>

<pallas_src>
import functools

import jax
import jax.numpy as jnp
import numpy as np
from jax.experimental import pallas as pl
from jax.experimental.pallas import tpu as pltpu


def _mlp_kernel(x_ref, w1_ref, b1_ref, w2_ref, b2_ref, w3_ref, b3_ref, o_ref):
    # fc1 + relu  (MXU matmul, f32 accumulation; epilogue in f32 on the VPU)
    h = jnp.dot(x_ref[...], w1_ref[...], preferred_element_type=jnp.float32)
    h = jnp.maximum(h + b1_ref[...], 0.0)
    # fc2 + relu
    h = jnp.dot(h.astype(w2_ref.dtype), w2_ref[...],
                preferred_element_type=jnp.float32)
    h = jnp.maximum(h + b2_ref[...], 0.0)
    # fc3 (no activation)
    out = jnp.dot(h.astype(w3_ref.dtype), w3_ref[...],
                  preferred_element_type=jnp.float32)
    out = out + b3_ref[...]
    o_ref[...] = out.astype(o_ref.dtype)


def _round_up(n, m):
    return ((n + m - 1) // m) * m


def _pad2(a, rows, cols):
    return jnp.pad(a, ((0, rows - a.shape[0]), (0, cols - a.shape[1])))


@functools.partial(jax.jit, static_argnames=("block_batch",))
def two_layer_fc(x, params, *, block_batch=256):
    """Forward pass of TwoLayerFC: fc3(relu(fc2(relu(fc1(x)))))."""
    w1, b1, w2, b2, w3, b3 = params
    batch, num_in = x.shape
    hidden = w1.shape[1]
    num_out = w3.shape[1]
    itemsize = x.dtype.itemsize
    w_itemsize = w1.dtype.itemsize

    # Pad feature dims to the 128-lane width; batch tile is a multiple of 8.
    in_p = _round_up(num_in, 128)
    hid_p = _round_up(hidden, 128)
    out_p = _round_up(num_out, 128)
    tb = max(8, min(block_batch, _round_up(batch, 8)))
    batch_p = _round_up(batch, tb)

    x_p = _pad2(x, batch_p, in_p)
    w1_p = _pad2(w1, in_p, hid_p)
    w2_p = _pad2(w2, hid_p, hid_p)
    w3_p = _pad2(w3, hid_p, out_p)
    # Biases pre-cast to f32 -> kernel epilogue is cast-free.
    b1_p = _pad2(b1.astype(jnp.float32), 1, hid_p)
    b2_p = _pad2(b2.astype(jnp.float32), 1, hid_p)
    b3_p = _pad2(b3.astype(jnp.float32), 1, out_p)

    def resident(shape):
        # Weights / biases: same block for every grid step -> VMEM-resident,
        # fetched from HBM only once.
        return pl.BlockSpec(shape, lambda i: (0, 0))

    # Advisory cost estimate for XLA's scheduler.
    flops = 2 * batch * (num_in * hidden + hidden * hidden + hidden * num_out)
    weight_bytes = (in_p * hid_p + hid_p * hid_p + hid_p * out_p) * w_itemsize
    bias_bytes = (2 * hid_p + out_p) * 4
    bytes_accessed = (weight_bytes + bias_bytes
                      + batch_p * in_p * itemsize
                      + batch_p * out_p * itemsize)

    # VMEM budget: resident weights/biases + double-buffered x/out tiles +
    # live f32 hidden activations, with 2x headroom; capped at 64 MiB so the
    # plan also fits v7x's smaller VMEM.
    tile_bytes = 2 * 2 * (tb * in_p + tb * out_p) * itemsize
    h_bytes = 2 * tb * hid_p * 4
    vmem_limit = int(min(
        64 << 20,
        max(16 << 20, 2 * (weight_bytes + bias_bytes + tile_bytes + h_bytes))))
    # TODO(synk): for hidden_dim beyond ~2K (f32) the weight-resident plan
    # exceeds v7x's 64 MiB VMEM; add an "arbitrary" reduction grid axis over
    # hidden_dim with a VMEM f32 accumulator + pl.when init/finalize.

    out_padded = pl.pallas_call(
        _mlp_kernel,
        out_shape=jax.ShapeDtypeStruct((batch_p, out_p), x.dtype),
        grid=(batch_p // tb,),
        in_specs=[
            pl.BlockSpec((tb, in_p), lambda i: (i, 0)),   # x: pipelined per tile
            resident((in_p, hid_p)),                      # w1
            resident((1, hid_p)),                         # b1
            resident((hid_p, hid_p)),                     # w2
            resident((1, hid_p)),                         # b2
            resident((hid_p, out_p)),                     # w3
            resident((1, out_p)),                         # b3
        ],
        out_specs=pl.BlockSpec((tb, out_p), lambda i: (i, 0)),
        compiler_params=pltpu.CompilerParams(
            dimension_semantics=("parallel",),
            vmem_limit_bytes=vmem_limit,
        ),
        cost_estimate=pl.CostEstimate(
            flops=int(flops), transcendentals=0,
            bytes_accessed=int(bytes_accessed)),
    )(x_p, w1_p, b1_p, w2_p, b2_p, w3_p, b3_p)

    return out_padded[:batch, :num_out]


def init_params(key, num_in, num_out, hidden_dim, dtype=jnp.float32):
    """Init mimicking torch.nn.Linear defaults (U[-1/sqrt(fan_in), +1/sqrt(fan_in)]).
    Weights stored pre-transposed as [in, out]; biases as [1, out].
    Use dtype=jnp.bfloat16 on v6e/v7x for ~2x MXU / HBM-weight-traffic wins."""
    keys = jax.random.split(key, 6)

    def _layer(kw, kb, fan_in, fan_out):
        bound = 1.0 / np.sqrt(fan_in)
        w = jax.random.uniform(kw, (fan_in, fan_out), dtype, -bound, bound)
        b = jax.random.uniform(kb, (1, fan_out), dtype, -bound, bound)
        return w, b

    w1, b1 = _layer(keys[0], keys[1], num_in, hidden_dim)
    w2, b2 = _layer(keys[2], keys[3], hidden_dim, hidden_dim)
    w3, b3 = _layer(keys[4], keys[5], hidden_dim, num_out)
    return (w1, b1, w2, b2, w3, b3)


def _reference(x, params):
    w1, b1, w2, b2, w3, b3 = params
    h = jax.nn.relu(x @ w1 + b1)
    h = jax.nn.relu(h @ w2 + b2)
    return h @ w3 + b3


if __name__ == "__main__":
    batch, num_in, hidden_dim, num_out = 64, 16, 32, 8

    key = jax.random.PRNGKey(0)
    k_x, k_p = jax.random.split(key)
    x = jax.random.normal(k_x, (batch, num_in), dtype=jnp.float32)
    params = init_params(k_p, num_in, num_out, hidden_dim)

    out = jax.block_until_ready(two_layer_fc(x, params))

    ref = _reference(x, params)
    np.testing.assert_allclose(np.asarray(out), np.asarray(ref), rtol=1e-5, atol=1e-5)

    print("KERNEL_OK")
</pallas_src>

<mosaic_0001>
module attributes {stable_mosaic.version = 11 : i64} {
  func.func @_mlp_kernel(%arg0: i32, %arg1: memref<64x128xf32, #tpu.memory_space<vmem>>, %arg2: memref<128x128xf32, #tpu.memory_space<vmem>>, %arg3: memref<1x128xf32, #tpu.memory_space<vmem>>, %arg4: memref<128x128xf32, #tpu.memory_space<vmem>>, %arg5: memref<1x128xf32, #tpu.memory_space<vmem>>, %arg6: memref<128x128xf32, #tpu.memory_space<vmem>>, %arg7: memref<1x128xf32, #tpu.memory_space<vmem>>, %arg8: memref<64x128xf32, #tpu.memory_space<vmem>>) attributes {dimension_semantics = [#tpu.dimension_semantics<parallel>], iteration_bounds = array<i64: 1>, scalar_prefetch = 0 : i64, scratch_operands = 0 : i64, tpu.core_type = #tpu.core_type<tc>, window_params = [{transform_indices = @transform_0, window_bounds = array<i64: 64, 128>}, {pipeline_mode = #tpu.pipeline_mode<synchronous>, transform_indices = @transform_1, window_bounds = array<i64: 128, 128>}, {pipeline_mode = #tpu.pipeline_mode<synchronous>, transform_indices = @transform_2, window_bounds = array<i64: 1, 128>}, {pipeline_mode = #tpu.pipeline_mode<synchronous>, transform_indices = @transform_3, window_bounds = array<i64: 128, 128>}, {pipeline_mode = #tpu.pipeline_mode<synchronous>, transform_indices = @transform_4, window_bounds = array<i64: 1, 128>}, {pipeline_mode = #tpu.pipeline_mode<synchronous>, transform_indices = @transform_5, window_bounds = array<i64: 128, 128>}, {pipeline_mode = #tpu.pipeline_mode<synchronous>, transform_indices = @transform_6, window_bounds = array<i64: 1, 128>}, {transform_indices = @transform_7, window_bounds = array<i64: 64, 128>}]} {
    %c0 = arith.constant 0 : index
    %c0_0 = arith.constant 0 : index
    %0 = vector.load %arg1[%c0, %c0_0] : memref<64x128xf32, #tpu.memory_space<vmem>>, vector<64x128xf32>
    %c0_1 = arith.constant 0 : index
    %c0_2 = arith.constant 0 : index
    %1 = vector.load %arg2[%c0_1, %c0_2] : memref<128x128xf32, #tpu.memory_space<vmem>>, vector<128x128xf32>
    %cst = arith.constant dense<0.000000e+00> : vector<64x128xf32>
    %2 = tpu.matmul %0, %1, %cst {dimension_numbers = #tpu.dot_dimension_numbers<[1], [0], [0], [1], [0, 0, 1, 1], [], []>} : vector<64x128xf32>, vector<128x128xf32>, vector<64x128xf32> -> vector<64x128xf32>
    %c0_3 = arith.constant 0 : index
    %c0_4 = arith.constant 0 : index
    %3 = vector.load %arg3[%c0_3, %c0_4] : memref<1x128xf32, #tpu.memory_space<vmem>>, vector<1x128xf32>
    %4 = vector.broadcast %3 : vector<1x128xf32> to vector<64x128xf32>
    %5 = arith.addf %2, %4 : vector<64x128xf32>
    %cst_5 = arith.constant 0.000000e+00 : f32
    %6 = vector.broadcast %cst_5 : f32 to vector<64x128xf32>
    %7 = arith.maximumf %5, %6 : vector<64x128xf32>
    %c0_6 = arith.constant 0 : index
    %c0_7 = arith.constant 0 : index
    %8 = vector.load %arg4[%c0_6, %c0_7] : memref<128x128xf32, #tpu.memory_space<vmem>>, vector<128x128xf32>
    %cst_8 = arith.constant dense<0.000000e+00> : vector<64x128xf32>
    %9 = tpu.matmul %7, %8, %cst_8 {dimension_numbers = #tpu.dot_dimension_numbers<[1], [0], [0], [1], [0, 0, 1, 1], [], []>} : vector<64x128xf32>, vector<128x128xf32>, vector<64x128xf32> -> vector<64x128xf32>
    %c0_9 = arith.constant 0 : index
    %c0_10 = arith.constant 0 : index
    %10 = vector.load %arg5[%c0_9, %c0_10] : memref<1x128xf32, #tpu.memory_space<vmem>>, vector<1x128xf32>
    %11 = vector.broadcast %10 : vector<1x128xf32> to vector<64x128xf32>
    %12 = arith.addf %9, %11 : vector<64x128xf32>
    %cst_11 = arith.constant 0.000000e+00 : f32
    %13 = vector.broadcast %cst_11 : f32 to vector<64x128xf32>
    %14 = arith.maximumf %12, %13 : vector<64x128xf32>
    %c0_12 = arith.constant 0 : index
    %c0_13 = arith.constant 0 : index
    %15 = vector.load %arg6[%c0_12, %c0_13] : memref<128x128xf32, #tpu.memory_space<vmem>>, vector<128x128xf32>
    %cst_14 = arith.constant dense<0.000000e+00> : vector<64x128xf32>
    %16 = tpu.matmul %14, %15, %cst_14 {dimension_numbers = #tpu.dot_dimension_numbers<[1], [0], [0], [1], [0, 0, 1, 1], [], []>} : vector<64x128xf32>, vector<128x128xf32>, vector<64x128xf32> -> vector<64x128xf32>
    %c0_15 = arith.constant 0 : index
    %c0_16 = arith.constant 0 : index
    %17 = vector.load %arg7[%c0_15, %c0_16] : memref<1x128xf32, #tpu.memory_space<vmem>>, vector<1x128xf32>
    %18 = vector.broadcast %17 : vector<1x128xf32> to vector<64x128xf32>
    %19 = arith.addf %16, %18 : vector<64x128xf32>
    %c0_17 = arith.constant 0 : index
    %c0_18 = arith.constant 0 : index
    %20 = vector.load %arg8[%c0_17, %c0_18] : memref<64x128xf32, #tpu.memory_space<vmem>>, vector<64x128xf32>
    tpu.vector_store %arg8[%c0_17, %c0_18], %19 {strides = array<i32>} : memref<64x128xf32, #tpu.memory_space<vmem>>, vector<64x128xf32>,
    return
  }
  func.func @transform_0(%arg0: i32) -> (i32, i32) {
    %c0_i32 = arith.constant 0 : i32
    %c0_i32_0 = arith.constant 0 : i32
    return %arg0, %c0_i32 : i32, i32
  }
  func.func @transform_1(%arg0: i32) -> (i32, i32) {
    %c0_i32 = arith.constant 0 : i32
    %c0_i32_0 = arith.constant 0 : i32
    %c0_i32_1 = arith.constant 0 : i32
    return %c0_i32, %c0_i32_0 : i32, i32
  }
  func.func @transform_2(%arg0: i32) -> (i32, i32) {
    %c0_i32 = arith.constant 0 : i32
    %c0_i32_0 = arith.constant 0 : i32
    %c0_i32_1 = arith.constant 0 : i32
    return %c0_i32, %c0_i32_0 : i32, i32
  }
  func.func @transform_3(%arg0: i32) -> (i32, i32) {
    %c0_i32 = arith.constant 0 : i32
    %c0_i32_0 = arith.constant 0 : i32
    %c0_i32_1 = arith.constant 0 : i32
    return %c0_i32, %c0_i32_0 : i32, i32
  }
  func.func @transform_4(%arg0: i32) -> (i32, i32) {
    %c0_i32 = arith.constant 0 : i32
    %c0_i32_0 = arith.constant 0 : i32
    %c0_i32_1 = arith.constant 0 : i32
    return %c0_i32, %c0_i32_0 : i32, i32
  }
  func.func @transform_5(%arg0: i32) -> (i32, i32) {
    %c0_i32 = arith.constant 0 : i32
    %c0_i32_0 = arith.constant 0 : i32
    %c0_i32_1 = arith.constant 0 : i32
    return %c0_i32, %c0_i32_0 : i32, i32
  }
  func.func @transform_6(%arg0: i32) -> (i32, i32) {
    %c0_i32 = arith.constant 0 : i32
    %c0_i32_0 = arith.constant 0 : i32
    %c0_i32_1 = arith.constant 0 : i32
    return %c0_i32, %c0_i32_0 : i32, i32
  }
  func.func @transform_7(%arg0: i32) -> (i32, i32) {
    %c0_i32 = arith.constant 0 : i32
    %c0_i32_0 = arith.constant 0 : i32
    return %arg0, %c0_i32 : i32, i32
  }
}

</mosaic_0001>

<llo_original>
// kernel: two_layer_fc.1
$region0: #{two_layer_fc.1}
  #allocation0 [shape = 'u32[]', space=smem, size = 0x4, offset = 0x4, fixed_abs, tag = 'smem constant byte address 0x4 - core index']
  #allocation1 [shape = 'u32[144,128]{1,0:T(1,128)}', space=vmem, size = 0x12000, scoped, tag = 'internal scratch']
  %s0 = inlined_call_operand.vmem [shape: f32[64,128], index: 0, kind: input, shape index: {}]
  %s1 = inlined_call_operand.vmem [shape: f32[128,128], index: 1, kind: input, shape index: {}]
  %s2 = inlined_call_operand.vmem [shape: f32[1,128], index: 2, kind: input, shape index: {}]
  %s3 = inlined_call_operand.vmem [shape: f32[128,128], index: 3, kind: input, shape index: {}]
  %s4 = inlined_call_operand.vmem [shape: f32[1,128], index: 4, kind: input, shape index: {}]
  %s5 = inlined_call_operand.vmem [shape: f32[128,128], index: 5, kind: input, shape index: {}]
  %s6 = inlined_call_operand.vmem [shape: f32[1,128], index: 6, kind: input, shape index: {}]
  %s7 = inlined_call_operand.vmem [shape: f32[64,128], index: 7, kind: output, shape index: {}]
  %s8 = sld [smem:[#allocation0]]
  $region38: #{two_layer_fc.1} parent=0
    _
  %s10 = ssub.s32 1, %s8
  %s11 = scalar_select 0, %s10, %s8
  // Predicated region
  $region2: #{two_layer_fc.1} parent=0 // pred_check
    _
  $region3: #{two_layer_fc.1} parent=0 // pred_check_branch
    %13 = sbr.rel (0) target = $region5
  $region4: #{two_layer_fc.1} parent=0 // pred_region
    _
  $region5: #{two_layer_fc.1} parent=0 // pred_fallthru
    _
  // Predicated region
  $region6: #{two_layer_fc.1} parent=0 // pred_check
    _
  $region7: #{two_layer_fc.1} parent=0 // pred_check_branch
    %15 = sbr.rel (0) target = $region9
  $region8: #{two_layer_fc.1} parent=0 // pred_region
    _
  $region9: #{two_layer_fc.1} parent=0 // pred_fallthru
    _
  // Predicated region
  $region10: #{two_layer_fc.1} parent=0 // pred_check
    _
  $region11: #{two_layer_fc.1} parent=0 // pred_check_branch
    %17 = sbr.rel (0) target = $region13
  $region12: #{two_layer_fc.1} parent=0 // pred_region
    _
  $region13: #{two_layer_fc.1} parent=0 // pred_fallthru
    _
  // Predicated region
  $region14: #{two_layer_fc.1} parent=0 // pred_check
    _
  $region15: #{two_layer_fc.1} parent=0 // pred_check_branch
    %19 = sbr.rel (0) target = $region17
  $region16: #{two_layer_fc.1} parent=0 // pred_region
    _
  $region17: #{two_layer_fc.1} parent=0 // pred_fallthru
    _
  // Predicated region
  $region18: #{two_layer_fc.1} parent=0 // pred_check
    _
  $region19: #{two_layer_fc.1} parent=0 // pred_check_branch
    %21 = sbr.rel (0) target = $region21
  $region20: #{two_layer_fc.1} parent=0 // pred_region
    _
  $region21: #{two_layer_fc.1} parent=0 // pred_fallthru
    _
  // Predicated region
  $region22: #{two_layer_fc.1} parent=0 // pred_check
    _
  $region23: #{two_layer_fc.1} parent=0 // pred_check_branch
    %23 = sbr.rel (0) target = $region25
  $region24: #{two_layer_fc.1} parent=0 // pred_region
    _
  $region25: #{two_layer_fc.1} parent=0 // pred_fallthru
    _
  // Predicated region
  $region26: #{two_layer_fc.1} parent=0 // pred_check
    _
  $region27: #{two_layer_fc.1} parent=0 // pred_check_branch
    %25 = sbr.rel (0) target = $region29
  $region28: #{two_layer_fc.1} parent=0 // pred_region
    _
  $region29: #{two_layer_fc.1} parent=0 // pred_fallthru
    _
  %v26 = vld [vmem:[%s0] sm:$0xff]
  %v27 = vld [vmem:[%s0 + $0x8] sm:$0xff]
  %v28 = vld [vmem:[%s0 + $0x10] sm:$0xff]
  %v29 = vld [vmem:[%s0 + $0x18] sm:$0xff]
  %v30 = vld [vmem:[%s0 + $0x20] sm:$0xff]
  %v31 = vld [vmem:[%s0 + $0x28] sm:$0xff]
  %v32 = vld [vmem:[%s0 + $0x30] sm:$0xff]
  %v33 = vld [vmem:[%s0 + $0x38] sm:$0xff]
  %v34 = vld [vmem:[%s1] sm:$0xff]
  %v35 = vld [vmem:[%s1 + $0x8] sm:$0xff]
  %v36 = vld [vmem:[%s1 + $0x10] sm:$0xff]
  %v37 = vld [vmem:[%s1 + $0x18] sm:$0xff]
  %v38 = vld [vmem:[%s1 + $0x20] sm:$0xff]
  %v39 = vld [vmem:[%s1 + $0x28] sm:$0xff]
  %v40 = vld [vmem:[%s1 + $0x30] sm:$0xff]
  %v41 = vld [vmem:[%s1 + $0x38] sm:$0xff]
  %v42 = vld [vmem:[%s1 + $0x40] sm:$0xff]
  %v43 = vld [vmem:[%s1 + $0x48] sm:$0xff]
  %v44 = vld [vmem:[%s1 + $0x50] sm:$0xff]
  %v45 = vld [vmem:[%s1 + $0x58] sm:$0xff]
  %v46 = vld [vmem:[%s1 + $0x60] sm:$0xff]
  %v47 = vld [vmem:[%s1 + $0x68] sm:$0xff]
  %v48 = vld [vmem:[%s1 + $0x70] sm:$0xff]
  %v49 = vld [vmem:[%s1 + $0x78] sm:$0xff]
  %v50 = vld [vmem:[%s2] sm:$0x1]
  %v52 = vlaneseq
  %v53 = vshrl.u32 %v52, 7
  %v54 = vsub.s32 0, %v53
  %v55 = vrot.slane %v50, %v54
  %57 = vmatprep.subr.mxu0 0.0
  %58 = vmatpush1.msra.mxu0 %v34
  %59 = vmatprep.subr.mxu0 0.0
  %60 = vmatpush1.msra.mxu0 %v35
  %61 = vmatprep.subr.mxu0 0.0
  %62 = vmatpush1.msra.mxu0 %v36
  %63 = vmatprep.subr.mxu0 0.0
  %64 = vmatpush1.msra.mxu0 %v37
  %65 = vmatprep.subr.mxu0 0.0
  %66 = vmatpush1.msra.mxu0 %v38
  %67 = vmatprep.subr.mxu0 0.0
  %68 = vmatpush1.msra.mxu0 %v39
  %69 = vmatprep.subr.mxu0 0.0
  %70 = vmatpush1.msra.mxu0 %v40
  %71 = vmatprep.subr.mxu0 0.0
  %72 = vmatpush1.msra.mxu0 %v41
  %73 = vmatprep.subr.mxu0 0.0
  %74 = vmatpush1.msra.mxu0 %v42
  %75 = vmatprep.subr.mxu0 0.0
  %76 = vmatpush1.msra.mxu0 %v43
  %77 = vmatprep.subr.mxu0 0.0
  %78 = vmatpush1.msra.mxu0 %v44
  %79 = vmatprep.subr.mxu0 0.0
  %80 = vmatpush1.msra.mxu0 %v45
  %81 = vmatprep.subr.mxu0 0.0
  %82 = vmatpush1.msra.mxu0 %v46
  %83 = vmatprep.subr.mxu0 0.0
  %84 = vmatpush1.msra.mxu0 %v47
  %85 = vmatprep.subr.mxu0 0.0
  %86 = vmatpush1.msra.mxu0 %v48
  %87 = vmatprep.subr.mxu0 0.0
  %88 = vmatpush1.msra.mxu0 %v49
  %89 = vmatprep.subr.mxu0 0.0
  %90 = vmatpush1.msra.mxu0 0.0
  %91 = vmatprep.subr.mxu0 0.0
  %92 = vmatpush1.msra.mxu0 0.0
  %93 = vmatprep.subr.mxu0 0.0
  %94 = vmatpush1.msra.mxu0 0.0
  %95 = vmatprep.subr.mxu0 0.0
  %96 = vmatpush1.msra.mxu0 0.0
  %97 = vmatprep.subr.mxu0 0.0
  %98 = vmatpush1.msra.mxu0 0.0
  %99 = vmatprep.subr.mxu0 0.0
  %100 = vmatpush1.msra.mxu0 0.0
  %101 = vmatprep.subr.mxu0 0.0
  %102 = vmatpush1.msra.mxu0 0.0
  %103 = vmatprep.subr.mxu0 0.0
  %104 = vmatpush1.msra.mxu0 0.0
  %105 = vmatprep.subr.mxu0 0.0
  %106 = vmatpush1.msra.mxu0 0.0
  %107 = vmatprep.subr.mxu0 0.0
  %108 = vmatpush1.msra.mxu0 0.0
  %109 = vmatprep.subr.mxu0 0.0
  %110 = vmatpush1.msra.mxu0 0.0
  %111 = vmatprep.subr.mxu0 0.0
  %112 = vmatpush1.msra.mxu0 0.0
  %113 = vmatprep.subr.mxu0 0.0
  %114 = vmatpush1.msra.mxu0 0.0
  %115 = vmatprep.subr.mxu0 0.0
  %116 = vmatpush1.msra.mxu0 0.0
  %117 = vmatprep.subr.mxu0 0.0
  %118 = vmatpush1.msra.mxu0 0.0
  %119 = vmatprep.subr.mxu0 0.0
  %120 = vmatpush1.msra.mxu0 0.0
  %121 = vmatprep.mubr.f32.mxu0 0.0
  %122 = vmatmul.mubr.f32.gmra.mrb[0].mxu0 %v26
  %v123 = vpop.f32.mrb[0].mxu0
  %v124 = vadd.f32 %v55, %v123
  %v125 = vpop.f32.mrb[0].mxu0
  %126 = vmatprep.mubr.f32.mxu0 0.0
  %127 = vmatmul.mubr.f32.gmra.mrb[0].mxu0 %v27
  %v128 = vpop.f32.mrb[0].mxu0
  %v129 = vadd.f32 %v55, %v128
  %v130 = vpop.f32.mrb[0].mxu0
  %131 = vmatprep.mubr.f32.mxu0 0.0
  %132 = vmatmul.mubr.f32.gmra.mrb[0].mxu0 %v28
  %v133 = vpop.f32.mrb[0].mxu0
  %v134 = vadd.f32 %v55, %v133
  %v135 = vpop.f32.mrb[0].mxu0
  %136 = vmatprep.mubr.f32.mxu0 0.0
  %137 = vmatmul.mubr.f32.gmra.mrb[0].mxu0 %v29
  %v138 = vpop.f32.mrb[0].mxu0
  %v139 = vadd.f32 %v55, %v138
  %v140 = vpop.f32.mrb[0].mxu0
  %141 = vmatprep.mubr.f32.mxu0 0.0
  %142 = vmatmul.mubr.f32.gmra.mrb[0].mxu0 %v30
  %v143 = vpop.f32.mrb[0].mxu0
  %v144 = vadd.f32 %v55, %v143
  %v145 = vpop.f32.mrb[0].mxu0
  %146 = vmatprep.mubr.f32.mxu0 0.0
  %147 = vmatmul.mubr.f32.gmra.mrb[0].mxu0 %v31
  %v148 = vpop.f32.mrb[0].mxu0
  %v149 = vadd.f32 %v55, %v148
  %v150 = vpop.f32.mrb[0].mxu0
  %151 = vmatprep.mubr.f32.mxu0 0.0
  %152 = vmatmul.mubr.f32.gmra.mrb[0].mxu0 %v32
  %v153 = vpop.f32.mrb[0].mxu0
  %v154 = vadd.f32 %v55, %v153
  %v155 = vpop.f32.mrb[0].mxu0
  %156 = vmatprep.mubr.f32.mxu0 0.0
  %157 = vmatmul.mubr.f32.gmra.mrb[0].mxu0 %v33
  %v158 = vpop.f32.mrb[0].mxu0
  %v159 = vadd.f32 %v55, %v158
  %v160 = vpop.f32.mrb[0].mxu0
  %161 = vdwg.mxu0
  %v162 = vmax.f32 %v124, 0.0
  %v163 = vmax.f32 %v129, 0.0
  %v164 = vmax.f32 %v134, 0.0
  %v165 = vmax.f32 %v139, 0.0
  %v166 = vmax.f32 %v144, 0.0
  %v167 = vmax.f32 %v149, 0.0
  %v168 = vmax.f32 %v154, 0.0
  %v169 = vmax.f32 %v159, 0.0
  %v170 = vld [vmem:[%s3] sm:$0xff]
  %v171 = vld [vmem:[%s3 + $0x8] sm:$0xff]
  %v172 = vld [vmem:[%s3 + $0x10] sm:$0xff]
  %v173 = vld [vmem:[%s3 + $0x18] sm:$0xff]
  %v174 = vld [vmem:[%s3 + $0x20] sm:$0xff]
  %v175 = vld [vmem:[%s3 + $0x28] sm:$0xff]
  %v176 = vld [vmem:[%s3 + $0x30] sm:$0xff]
  %v177 = vld [vmem:[%s3 + $0x38] sm:$0xff]
  %v178 = vld [vmem:[%s3 + $0x40] sm:$0xff]
  %v179 = vld [vmem:[%s3 + $0x48] sm:$0xff]
  %v180 = vld [vmem:[%s3 + $0x50] sm:$0xff]
  %v181 = vld [vmem:[%s3 + $0x58] sm:$0xff]
  %v182 = vld [vmem:[%s3 + $0x60] sm:$0xff]
  %v183 = vld [vmem:[%s3 + $0x68] sm:$0xff]
  %v184 = vld [vmem:[%s3 + $0x70] sm:$0xff]
  %v185 = vld [vmem:[%s3 + $0x78] sm:$0xff]
  %v186 = vld [vmem:[%s4] sm:$0x1]
  %v188 = vlaneseq
  %v189 = vshrl.u32 %v188, 7
  %v190 = vsub.s32 0, %v189
  %v191 = vrot.slane %v186, %v190
  %193 = vmatprep.subr.mxu0 0.0
  %194 = vmatpush1.msra.mxu0 %v170
  %195 = vmatprep.subr.mxu0 0.0
  %196 = vmatpush1.msra.mxu0 %v171
  %197 = vmatprep.subr.mxu0 0.0
  %198 = vmatpush1.msra.mxu0 %v172
  %199 = vmatprep.subr.mxu0 0.0
  %200 = vmatpush1.msra.mxu0 %v173
  %201 = vmatprep.subr.mxu0 0.0
  %202 = vmatpush1.msra.mxu0 %v174
  %203 = vmatprep.subr.mxu0 0.0
  %204 = vmatpush1.msra.mxu0 %v175
  %205 = vmatprep.subr.mxu0 0.0
  %206 = vmatpush1.msra.mxu0 %v176
  %207 = vmatprep.subr.mxu0 0.0
  %208 = vmatpush1.msra.mxu0 %v177
  %209 = vmatprep.subr.mxu0 0.0
  %210 = vmatpush1.msra.mxu0 %v178
  %211 = vmatprep.subr.mxu0 0.0
  %212 = vmatpush1.msra.mxu0 %v179
  %213 = vmatprep.subr.mxu0 0.0
  %214 = vmatpush1.msra.mxu0 %v180
  %215 = vmatprep.subr.mxu0 0.0
  %216 = vmatpush1.msra.mxu0 %v181
  %217 = vmatprep.subr.mxu0 0.0
  %218 = vmatpush1.msra.mxu0 %v182
  %219 = vmatprep.subr.mxu0 0.0
  %220 = vmatpush1.msra.mxu0 %v183
  %221 = vmatprep.subr.mxu0 0.0
  %222 = vmatpush1.msra.mxu0 %v184
  %223 = vmatprep.subr.mxu0 0.0
  %224 = vmatpush1.msra.mxu0 %v185
  %225 = vmatprep.subr.mxu0 0.0
  %226 = vmatpush1.msra.mxu0 0.0
  %227 = vmatprep.subr.mxu0 0.0
  %228 = vmatpush1.msra.mxu0 0.0
  %229 = vmatprep.subr.mxu0 0.0
  %230 = vmatpush1.msra.mxu0 0.0
  %231 = vmatprep.subr.mxu0 0.0
  %232 = vmatpush1.msra.mxu0 0.0
  %233 = vmatprep.subr.mxu0 0.0
  %234 = vmatpush1.msra.mxu0 0.0
  %235 = vmatprep.subr.mxu0 0.0
  %236 = vmatpush1.msra.mxu0 0.0
  %237 = vmatprep.subr.mxu0 0.0
  %238 = vmatpush1.msra.mxu0 0.0
  %239 = vmatprep.subr.mxu0 0.0
  %240 = vmatpush1.msra.mxu0 0.0
  %241 = vmatprep.subr.mxu0 0.0
  %242 = vmatpush1.msra.mxu0 0.0
  %243 = vmatprep.subr.mxu0 0.0
  %244 = vmatpush1.msra.mxu0 0.0
  %245 = vmatprep.subr.mxu0 0.0
  %246 = vmatpush1.msra.mxu0 0.0
  %247 = vmatprep.subr.mxu0 0.0
  %248 = vmatpush1.msra.mxu0 0.0
  %249 = vmatprep.subr.mxu0 0.0
  %250 = vmatpush1.msra.mxu0 0.0
  %251 = vmatprep.subr.mxu0 0.0
  %252 = vmatpush1.msra.mxu0 0.0
  %253 = vmatprep.subr.mxu0 0.0
  %254 = vmatpush1.msra.mxu0 0.0
  %255 = vmatprep.subr.mxu0 0.0
  %256 = vmatpush1.msra.mxu0 0.0
  %257 = vmatprep.mubr.f32.mxu0 0.0
  %258 = vmatmul.mubr.f32.gmra.mrb[0].mxu0 %v162
  %v259 = vpop.f32.mrb[0].mxu0
  %v260 = vadd.f32 %v191, %v259
  %v261 = vpop.f32.mrb[0].mxu0
  %262 = vmatprep.mubr.f32.mxu0 0.0
  %263 = vmatmul.mubr.f32.gmra.mrb[0].mxu0 %v163
  %v264 = vpop.f32.mrb[0].mxu0
  %v265 = vadd.f32 %v191, %v264
  %v266 = vpop.f32.mrb[0].mxu0
  %267 = vmatprep.mubr.f32.mxu0 0.0
  %268 = vmatmul.mubr.f32.gmra.mrb[0].mxu0 %v164
  %v269 = vpop.f32.mrb[0].mxu0
  %v270 = vadd.f32 %v191, %v269
  %v271 = vpop.f32.mrb[0].mxu0
  %272 = vmatprep.mubr.f32.mxu0 0.0
  %273 = vmatmul.mubr.f32.gmra.mrb[0].mxu0 %v165
  %v274 = vpop.f32.mrb[0].mxu0
  %v275 = vadd.f32 %v191, %v274
  %v276 = vpop.f32.mrb[0].mxu0
  %277 = vmatprep.mubr.f32.mxu0 0.0
  %278 = vmatmul.mubr.f32.gmra.mrb[0].mxu0 %v166
  %v279 = vpop.f32.mrb[0].mxu0
  %v280 = vadd.f32 %v191, %v279
  %v281 = vpop.f32.mrb[0].mxu0
  %282 = vmatprep.mubr.f32.mxu0 0.0
  %283 = vmatmul.mubr.f32.gmra.mrb[0].mxu0 %v167
  %v284 = vpop.f32.mrb[0].mxu0
  %v285 = vadd.f32 %v191, %v284
  %v286 = vpop.f32.mrb[0].mxu0
  %287 = vmatprep.mubr.f32.mxu0 0.0
  %288 = vmatmul.mubr.f32.gmra.mrb[0].mxu0 %v168
  %v289 = vpop.f32.mrb[0].mxu0
  %v290 = vadd.f32 %v191, %v289
  %v291 = vpop.f32.mrb[0].mxu0
  %292 = vmatprep.mubr.f32.mxu0 0.0
  %293 = vmatmul.mubr.f32.gmra.mrb[0].mxu0 %v169
  %v294 = vpop.f32.mrb[0].mxu0
  %v295 = vadd.f32 %v191, %v294
  %v296 = vpop.f32.mrb[0].mxu0
  %297 = vdwg.mxu0
  %v298 = vmax.f32 %v260, 0.0
  %v299 = vmax.f32 %v265, 0.0
  %v300 = vmax.f32 %v270, 0.0
  %v301 = vmax.f32 %v275, 0.0
  %v302 = vmax.f32 %v280, 0.0
  %v303 = vmax.f32 %v285, 0.0
  %v304 = vmax.f32 %v290, 0.0
  %v305 = vmax.f32 %v295, 0.0
  %v306 = vld [vmem:[%s5] sm:$0xff]
  %v307 = vld [vmem:[%s5 + $0x8] sm:$0xff]
  %v308 = vld [vmem:[%s5 + $0x10] sm:$0xff]
  %v309 = vld [vmem:[%s5 + $0x18] sm:$0xff]
  %v310 = vld [vmem:[%s5 + $0x20] sm:$0xff]
  %v311 = vld [vmem:[%s5 + $0x28] sm:$0xff]
  %v312 = vld [vmem:[%s5 + $0x30] sm:$0xff]
  %v313 = vld [vmem:[%s5 + $0x38] sm:$0xff]
  %v314 = vld [vmem:[%s5 + $0x40] sm:$0xff]
  %v315 = vld [vmem:[%s5 + $0x48] sm:$0xff]
  %v316 = vld [vmem:[%s5 + $0x50] sm:$0xff]
  %v317 = vld [vmem:[%s5 + $0x58] sm:$0xff]
  %v318 = vld [vmem:[%s5 + $0x60] sm:$0xff]
  %v319 = vld [vmem:[%s5 + $0x68] sm:$0xff]
  %v320 = vld [vmem:[%s5 + $0x70] sm:$0xff]
  %v321 = vld [vmem:[%s5 + $0x78] sm:$0xff]
  %v322 = vld [vmem:[%s6] sm:$0x1]
  %v324 = vlaneseq
  %v325 = vshrl.u32 %v324, 7
  %v326 = vsub.s32 0, %v325
  %v327 = vrot.slane %v322, %v326
  %329 = vmatprep.subr.mxu0 0.0
  %330 = vmatpush1.msra.mxu0 %v306
  %331 = vmatprep.subr.mxu0 0.0
  %332 = vmatpush1.msra.mxu0 %v307
  %333 = vmatprep.subr.mxu0 0.0
  %334 = vmatpush1.msra.mxu0 %v308
  %335 = vmatprep.subr.mxu0 0.0
  %336 = vmatpush1.msra.mxu0 %v309
  %337 = vmatprep.subr.mxu0 0.0
  %338 = vmatpush1.msra.mxu0 %v310
  %339 = vmatprep.subr.mxu0 0.0
  %340 = vmatpush1.msra.mxu0 %v311
  %341 = vmatprep.subr.mxu0 0.0
  %342 = vmatpush1.msra.mxu0 %v312
  %343 = vmatprep.subr.mxu0 0.0
  %344 = vmatpush1.msra.mxu0 %v313
  %345 = vmatprep.subr.mxu0 0.0
  %346 = vmatpush1.msra.mxu0 %v314
  %347 = vmatprep.subr.mxu0 0.0
  %348 = vmatpush1.msra.mxu0 %v315
  %349 = vmatprep.subr.mxu0 0.0
  %350 = vmatpush1.msra.mxu0 %v316
  %351 = vmatprep.subr.mxu0 0.0
  %352 = vmatpush1.msra.mxu0 %v317
  %353 = vmatprep.subr.mxu0 0.0
  %354 = vmatpush1.msra.mxu0 %v318
  %355 = vmatprep.subr.mxu0 0.0
  %356 = vmatpush1.msra.mxu0 %v319
  %357 = vmatprep.subr.mxu0 0.0
  %358 = vmatpush1.msra.mxu0 %v320
  %359 = vmatprep.subr.mxu0 0.0
  %360 = vmatpush1.msra.mxu0 %v321
  %361 = vmatprep.subr.mxu0 0.0
  %362 = vmatpush1.msra.mxu0 0.0
  %363 = vmatprep.subr.mxu0 0.0
  %364 = vmatpush1.msra.mxu0 0.0
  %365 = vmatprep.subr.mxu0 0.0
  %366 = vmatpush1.msra.mxu0 0.0
  %367 = vmatprep.subr.mxu0 0.0
  %368 = vmatpush1.msra.mxu0 0.0
  %369 = vmatprep.subr.mxu0 0.0
  %370 = vmatpush1.msra.mxu0 0.0
  %371 = vmatprep.subr.mxu0 0.0
  %372 = vmatpush1.msra.mxu0 0.0
  %373 = vmatprep.subr.mxu0 0.0
  %374 = vmatpush1.msra.mxu0 0.0
  %375 = vmatprep.subr.mxu0 0.0
  %376 = vmatpush1.msra.mxu0 0.0
  %377 = vmatprep.subr.mxu0 0.0
  %378 = vmatpush1.msra.mxu0 0.0
  %379 = vmatprep.subr.mxu0 0.0
  %380 = vmatpush1.msra.mxu0 0.0
  %381 = vmatprep.subr.mxu0 0.0
  %382 = vmatpush1.msra.mxu0 0.0
  %383 = vmatprep.subr.mxu0 0.0
  %384 = vmatpush1.msra.mxu0 0.0
  %385 = vmatprep.subr.mxu0 0.0
  %386 = vmatpush1.msra.mxu0 0.0
  %387 = vmatprep.subr.mxu0 0.0
  %388 = vmatpush1.msra.mxu0 0.0
  %389 = vmatprep.subr.mxu0 0.0
  %390 = vmatpush1.msra.mxu0 0.0
  %391 = vmatprep.subr.mxu0 0.0
  %392 = vmatpush1.msra.mxu0 0.0
  %393 = vmatprep.mubr.f32.mxu0 0.0
  %394 = vmatmul.mubr.f32.gmra.mrb[0].mxu0 %v298
  %v395 = vpop.f32.mrb[0].mxu0
  %v396 = vadd.f32 %v327, %v395
  %v397 = vpop.f32.mrb[0].mxu0
  %398 = vmatprep.mubr.f32.mxu0 0.0
  %399 = vmatmul.mubr.f32.gmra.mrb[0].mxu0 %v299
  %v400 = vpop.f32.mrb[0].mxu0
  %v401 = vadd.f32 %v327, %v400
  %v402 = vpop.f32.mrb[0].mxu0
  %403 = vmatprep.mubr.f32.mxu0 0.0
  %404 = vmatmul.mubr.f32.gmra.mrb[0].mxu0 %v300
  %v405 = vpop.f32.mrb[0].mxu0
  %v406 = vadd.f32 %v327, %v405
  %v407 = vpop.f32.mrb[0].mxu0
  %408 = vmatprep.mubr.f32.mxu0 0.0
  %409 = vmatmul.mubr.f32.gmra.mrb[0].mxu0 %v301
  %v410 = vpop.f32.mrb[0].mxu0
  %v411 = vadd.f32 %v327, %v410
  %v412 = vpop.f32.mrb[0].mxu0
  %413 = vmatprep.mubr.f32.mxu0 0.0
  %414 = vmatmul.mubr.f32.gmra.mrb[0].mxu0 %v302
  %v415 = vpop.f32.mrb[0].mxu0
  %v416 = vadd.f32 %v327, %v415
  %v417 = vpop.f32.mrb[0].mxu0
  %418 = vmatprep.mubr.f32.mxu0 0.0
  %419 = vmatmul.mubr.f32.gmra.mrb[0].mxu0 %v303
  %v420 = vpop.f32.mrb[0].mxu0
  %v421 = vadd.f32 %v327, %v420
  %v422 = vpop.f32.mrb[0].mxu0
  %423 = vmatprep.mubr.f32.mxu0 0.0
  %424 = vmatmul.mubr.f32.gmra.mrb[0].mxu0 %v304
  %v425 = vpop.f32.mrb[0].mxu0
  %v426 = vadd.f32 %v327, %v425
  %v427 = vpop.f32.mrb[0].mxu0
  %428 = vmatprep.mubr.f32.mxu0 0.0
  %429 = vmatmul.mubr.f32.gmra.mrb[0].mxu0 %v305
  %v430 = vpop.f32.mrb[0].mxu0
  %v431 = vadd.f32 %v327, %v430
  %v432 = vpop.f32.mrb[0].mxu0
  %433 = vdwg.mxu0
  %434 = vst [vmem:[%s7] sm:$0xff] %v396
  %435 = vst [vmem:[%s7 + $0x8] sm:$0xff] %v401
  %436 = vst [vmem:[%s7 + $0x10] sm:$0xff] %v406
  %437 = vst [vmem:[%s7 + $0x18] sm:$0xff] %v411
  %438 = vst [vmem:[%s7 + $0x20] sm:$0xff] %v416
  %439 = vst [vmem:[%s7 + $0x28] sm:$0xff] %v421
  %440 = vst [vmem:[%s7 + $0x30] sm:$0xff] %v426
  %441 = vst [vmem:[%s7 + $0x38] sm:$0xff] %v431
  // Predicated region
  $region30: #{two_layer_fc.1} parent=0 // pred_check
    _
  $region31: #{two_layer_fc.1} parent=0 // pred_check_branch
    %443 = sbr.rel (0) target = $region33
  $region32: #{two_layer_fc.1} parent=0 // pred_region
    _
  $region33: #{two_layer_fc.1} parent=0 // pred_fallthru
    _
  // Predicated region
  $region34: #{two_layer_fc.1} parent=0 // pred_check
    _
  $region35: #{two_layer_fc.1} parent=0 // pred_check_branch
    %445 = sbr.rel (0) target = $region37
  $region36: #{two_layer_fc.1} parent=0 // pred_region
    _
  $region37: #{two_layer_fc.1} parent=0 // pred_fallthru
    _

</llo_original>
